<compile_context>
chip_gen: v5e
topology: v5e:2x2
jax: 0.10.0
libtpu: 0.0.40
codegen_flags: <defaults>
</compile_context>

<pallas_src>
import functools

import jax
import jax.numpy as jnp
from jax.experimental import pallas as pl
from jax.experimental.pallas import tpu as pltpu

BN_EPS = 1e-5


def _mlp_kernel(x_ref, w1_ref, b1_ref, w2_ref, b2_ref, wh_ref, bh_ref, o_ref):
    # Cast the streamed activations to bf16 in-kernel (no separate HBM pass).
    x = x_ref[...].astype(jnp.bfloat16)                           # (tb, 11)

    # Layer 1: Linear(11->128) [BN folded in] + ReLU. bf16 operands, f32 accum.
    h1 = jnp.dot(x, w1_ref[...], preferred_element_type=jnp.float32)
    h1 = jnp.maximum(h1 + b1_ref[...], 0.0)                       # f32 epilogue

    # Layer 2: Linear(128->64) [BN folded in] + ReLU.
    h2 = jnp.dot(h1.astype(jnp.bfloat16), w2_ref[...],
                 preferred_element_type=jnp.float32)
    h2 = jnp.maximum(h2 + b2_ref[...], 0.0)

    # Fused heads: [Linear(64->2) | Linear(64->6)] == Linear(64->8).
    o = jnp.dot(h2.astype(jnp.bfloat16), wh_ref[...],
                preferred_element_type=jnp.float32)
    o_ref[...] = (o + bh_ref[...]).astype(o_ref.dtype)


def _round_up(n, m):
    return (n + m - 1) // m * m


def _choose_tb(batch, tb_max):
    """Batch-tile height: multiple of 16 (bf16 sublane tile), capped by tb_max,
    and at most ~ceil(B/2) so the 'parallel' grid has >=2 steps (keeps both
    v7x TensorCores busy).  The kernel is overhead/HBM bound, so bigger tiles
    are better once the grid has a few steps."""
    tb_max = max(16, (tb_max // 16) * 16)
    half = _round_up(pl.cdiv(batch, 2), 16)
    return max(16, min(tb_max, half))


@functools.partial(jax.jit, static_argnames=("tb", "out_dtype"))
def multitask_forward(x, params, *, tb=4096, out_dtype=jnp.bfloat16):
    """x: [B, 11] float32/bfloat16.  Returns [B, 8] (detection | classification)."""
    w1, b1, w2, b2, wh, bh = params
    B = x.shape[0]
    tb = _choose_tb(B, tb)
    grid = (pl.cdiv(B, tb),)                 # ragged last block handled by Pallas

    const = lambda a: pl.BlockSpec(a.shape, lambda i: (0,) * a.ndim)

    return pl.pallas_call(
        _mlp_kernel,
        out_shape=jax.ShapeDtypeStruct((B, 8), out_dtype),
        grid=grid,
        in_specs=[
            pl.BlockSpec((tb, 11), lambda i: (i, 0)),   # streamed activations
            const(w1), const(b1),                        # resident weights/biases
            const(w2), const(b2),
            const(wh), const(bh),
        ],
        out_specs=pl.BlockSpec((tb, 8), lambda i: (i, 0)),
        compiler_params=pltpu.CompilerParams(
            dimension_semantics=("parallel",)),
        # VMEM at tb=4096: x 2x2 MB + out 2x1 MB + h1/h2/o intermediates ~5 MB,
        # comfortably inside the 32 MiB scoped default on v5e/v6e/v7x.  Raise
        # vmem_limit_bytes here if sweeping tb beyond ~8192.
    )(x, w1, b1, w2, b2, wh, bh)


def _xavier_uniform(key, out_f, in_f):
    # Matches nn.init.xavier_uniform_ on a [out_f, in_f] weight; returned
    # transposed to [in_f, out_f] for the x @ W convention in the kernel.
    bound = float(jnp.sqrt(6.0 / (in_f + out_f)))
    w = jax.random.uniform(key, (out_f, in_f), jnp.float32, -bound, bound)
    return w.T


def make_params(key):
    """Kernel params equivalent to a freshly-initialized module in eval mode:
    Xavier-uniform Linear weights, zero biases (as in _initialize_weights),
    eval-mode BatchNorm folded into the preceding Linear, heads concatenated.
    Weights stored bf16 (resident in VMEM), biases f32."""
    k1, k2, k3, k4 = jax.random.split(key, 4)
    # BN eval fold: scale = gamma / sqrt(running_var + eps) with default
    # gamma=1, running_var=1, running_mean=0, beta=0  =>  1/sqrt(1+eps).
    s1 = 1.0 / jnp.sqrt(1.0 + BN_EPS)
    s2 = 1.0 / jnp.sqrt(1.0 + BN_EPS)

    w1 = _xavier_uniform(k1, 128, 11) * s1                 # [11, 128], BN1 folded
    b1 = jnp.zeros((1, 128), jnp.float32) * s1
    w2 = _xavier_uniform(k2, 64, 128) * s2                 # [128, 64], BN2 folded
    b2 = jnp.zeros((1, 64), jnp.float32) * s2
    w_det = _xavier_uniform(k3, 2, 64)                     # [64, 2]
    w_cls = _xavier_uniform(k4, 6, 64)                     # [64, 6]
    wh = jnp.concatenate([w_det, w_cls], axis=1)           # [64, 8] == cat(dim=1)
    bh = jnp.zeros((1, 8), jnp.float32)

    bf16 = lambda w: w.astype(jnp.bfloat16)
    return (bf16(w1), b1, bf16(w2), b2, bf16(wh), bh)


def reference_forward(x, params):
    """Pure-JAX full-f32 (HIGHEST precision) eval-mode forward using the same
    (bf16-stored) weights.  The kernel deviates from this only by bf16 rounding
    of activations/output (roughly 1e-2 absolute worst case for N(0,1) inputs)."""
    w1, b1, w2, b2, wh, bh = params
    f32, hp = jnp.float32, jax.lax.Precision.HIGHEST
    h1 = jnp.maximum(jnp.dot(x.astype(f32), w1.astype(f32), precision=hp) + b1, 0.0)
    h2 = jnp.maximum(jnp.dot(h1, w2.astype(f32), precision=hp) + b2, 0.0)
    return jnp.dot(h2, wh.astype(f32), precision=hp) + bh


if __name__ == "__main__":
    key = jax.random.PRNGKey(0)
    kx, kp = jax.random.split(key)
    params = make_params(kp)

    # Small demo batch; tb auto-caps to 256 -> a 2-step "parallel" grid.
    B = 512
    x = jax.random.normal(kx, (B, 11), jnp.float32)
    out = jax.block_until_ready(multitask_forward(x, params))
    assert out.shape == (B, 8)

    ref = reference_forward(x, params)
    err = float(jnp.max(jnp.abs(out.astype(jnp.float32) - ref)))
    assert err < 2.5e-2, err                 # bf16 activation/output rounding headroom

    # Ragged batch (B % tb != 0): exercises the no-pad / masked-tail-block path.
    B2 = 300
    x2 = jax.random.normal(kx, (B2, 11), jnp.float32)
    out2 = jax.block_until_ready(multitask_forward(x2, params))
    err2 = float(jnp.max(jnp.abs(out2.astype(jnp.float32) - reference_forward(x2, params))))
    assert out2.shape == (B2, 8) and err2 < 2.5e-2, err2

    print("KERNEL_OK")
</pallas_src>

<mosaic_0001>
module attributes {stable_mosaic.version = 11 : i64} {
  func.func @_mlp_kernel(%arg0: i32, %arg1: memref<256x11xf32, #tpu.memory_space<vmem>>, %arg2: memref<11x128xbf16, #tpu.memory_space<vmem>>, %arg3: memref<1x128xf32, #tpu.memory_space<vmem>>, %arg4: memref<128x64xbf16, #tpu.memory_space<vmem>>, %arg5: memref<1x64xf32, #tpu.memory_space<vmem>>, %arg6: memref<64x8xbf16, #tpu.memory_space<vmem>>, %arg7: memref<1x8xf32, #tpu.memory_space<vmem>>, %arg8: memref<256x8xbf16, #tpu.memory_space<vmem>>) attributes {dimension_semantics = [#tpu.dimension_semantics<parallel>], iteration_bounds = array<i64: 2>, scalar_prefetch = 0 : i64, scratch_operands = 0 : i64, tpu.core_type = #tpu.core_type<tc>, window_params = [{transform_indices = @transform_0, window_bounds = array<i64: 256, 11>}, {pipeline_mode = #tpu.pipeline_mode<synchronous>, transform_indices = @transform_1, window_bounds = array<i64: 11, 128>}, {pipeline_mode = #tpu.pipeline_mode<synchronous>, transform_indices = @transform_2, window_bounds = array<i64: 1, 128>}, {pipeline_mode = #tpu.pipeline_mode<synchronous>, transform_indices = @transform_3, window_bounds = array<i64: 128, 64>}, {pipeline_mode = #tpu.pipeline_mode<synchronous>, transform_indices = @transform_4, window_bounds = array<i64: 1, 64>}, {pipeline_mode = #tpu.pipeline_mode<synchronous>, transform_indices = @transform_5, window_bounds = array<i64: 64, 8>}, {pipeline_mode = #tpu.pipeline_mode<synchronous>, transform_indices = @transform_6, window_bounds = array<i64: 1, 8>}, {transform_indices = @transform_7, window_bounds = array<i64: 256, 8>}]} {
    %c0 = arith.constant 0 : index
    %c0_0 = arith.constant 0 : index
    %0 = vector.load %arg1[%c0, %c0_0] : memref<256x11xf32, #tpu.memory_space<vmem>>, vector<256x11xf32>
    %1 = arith.truncf %0 : vector<256x11xf32> to vector<256x11xbf16>
    %c0_1 = arith.constant 0 : index
    %c0_2 = arith.constant 0 : index
    %2 = vector.load %arg2[%c0_1, %c0_2] : memref<11x128xbf16, #tpu.memory_space<vmem>>, vector<11x128xbf16>
    %cst = arith.constant dense<0.000000e+00> : vector<256x128xf32>
    %3 = tpu.matmul %1, %2, %cst {dimension_numbers = #tpu.dot_dimension_numbers<[1], [0], [0], [1], [0, 0, 1, 1], [], []>} : vector<256x11xbf16>, vector<11x128xbf16>, vector<256x128xf32> -> vector<256x128xf32>
    %c0_3 = arith.constant 0 : index
    %c0_4 = arith.constant 0 : index
    %4 = vector.load %arg3[%c0_3, %c0_4] : memref<1x128xf32, #tpu.memory_space<vmem>>, vector<1x128xf32>
    %5 = vector.broadcast %4 : vector<1x128xf32> to vector<256x128xf32>
    %6 = arith.addf %3, %5 : vector<256x128xf32>
    %cst_5 = arith.constant 0.000000e+00 : f32
    %7 = vector.broadcast %cst_5 : f32 to vector<256x128xf32>
    %8 = arith.maximumf %6, %7 : vector<256x128xf32>
    %9 = arith.truncf %8 : vector<256x128xf32> to vector<256x128xbf16>
    %c0_6 = arith.constant 0 : index
    %c0_7 = arith.constant 0 : index
    %10 = vector.load %arg4[%c0_6, %c0_7] : memref<128x64xbf16, #tpu.memory_space<vmem>>, vector<128x64xbf16>
    %cst_8 = arith.constant dense<0.000000e+00> : vector<256x64xf32>
    %11 = tpu.matmul %9, %10, %cst_8 {dimension_numbers = #tpu.dot_dimension_numbers<[1], [0], [0], [1], [0, 0, 1, 1], [], []>} : vector<256x128xbf16>, vector<128x64xbf16>, vector<256x64xf32> -> vector<256x64xf32>
    %c0_9 = arith.constant 0 : index
    %c0_10 = arith.constant 0 : index
    %12 = vector.load %arg5[%c0_9, %c0_10] : memref<1x64xf32, #tpu.memory_space<vmem>>, vector<1x64xf32>
    %13 = vector.broadcast %12 : vector<1x64xf32> to vector<256x64xf32>
    %14 = arith.addf %11, %13 : vector<256x64xf32>
    %cst_11 = arith.constant 0.000000e+00 : f32
    %15 = vector.broadcast %cst_11 : f32 to vector<256x64xf32>
    %16 = arith.maximumf %14, %15 : vector<256x64xf32>
    %17 = arith.truncf %16 : vector<256x64xf32> to vector<256x64xbf16>
    %c0_12 = arith.constant 0 : index
    %c0_13 = arith.constant 0 : index
    %18 = vector.load %arg6[%c0_12, %c0_13] : memref<64x8xbf16, #tpu.memory_space<vmem>>, vector<64x8xbf16>
    %cst_14 = arith.constant dense<0.000000e+00> : vector<256x8xf32>
    %19 = tpu.matmul %17, %18, %cst_14 {dimension_numbers = #tpu.dot_dimension_numbers<[1], [0], [0], [1], [0, 0, 1, 1], [], []>} : vector<256x64xbf16>, vector<64x8xbf16>, vector<256x8xf32> -> vector<256x8xf32>
    %c0_15 = arith.constant 0 : index
    %c0_16 = arith.constant 0 : index
    %20 = vector.load %arg7[%c0_15, %c0_16] : memref<1x8xf32, #tpu.memory_space<vmem>>, vector<1x8xf32>
    %21 = vector.broadcast %20 : vector<1x8xf32> to vector<256x8xf32>
    %22 = arith.addf %19, %21 : vector<256x8xf32>
    %23 = arith.truncf %22 : vector<256x8xf32> to vector<256x8xbf16>
    %c0_17 = arith.constant 0 : index
    %c0_18 = arith.constant 0 : index
    %24 = vector.load %arg8[%c0_17, %c0_18] : memref<256x8xbf16, #tpu.memory_space<vmem>>, vector<256x8xbf16>
    tpu.vector_store %arg8[%c0_17, %c0_18], %23 {strides = array<i32>} : memref<256x8xbf16, #tpu.memory_space<vmem>>, vector<256x8xbf16>,
    return
  }
  func.func @transform_0(%arg0: i32) -> (i32, i32) {
    %c0_i32 = arith.constant 0 : i32
    %c0_i32_0 = arith.constant 0 : i32
    return %arg0, %c0_i32 : i32, i32
  }
  func.func @transform_1(%arg0: i32) -> (i32, i32) {
    %c0_i32 = arith.constant 0 : i32
    %c0_i32_0 = arith.constant 0 : i32
    %c0_i32_1 = arith.constant 0 : i32
    return %c0_i32, %c0_i32_0 : i32, i32
  }
  func.func @transform_2(%arg0: i32) -> (i32, i32) {
    %c0_i32 = arith.constant 0 : i32
    %c0_i32_0 = arith.constant 0 : i32
    %c0_i32_1 = arith.constant 0 : i32
    return %c0_i32, %c0_i32_0 : i32, i32
  }
  func.func @transform_3(%arg0: i32) -> (i32, i32) {
    %c0_i32 = arith.constant 0 : i32
    %c0_i32_0 = arith.constant 0 : i32
    %c0_i32_1 = arith.constant 0 : i32
    return %c0_i32, %c0_i32_0 : i32, i32
  }
  func.func @transform_4(%arg0: i32) -> (i32, i32) {
    %c0_i32 = arith.constant 0 : i32
    %c0_i32_0 = arith.constant 0 : i32
    %c0_i32_1 = arith.constant 0 : i32
    return %c0_i32, %c0_i32_0 : i32, i32
  }
  func.func @transform_5(%arg0: i32) -> (i32, i32) {
    %c0_i32 = arith.constant 0 : i32
    %c0_i32_0 = arith.constant 0 : i32
    %c0_i32_1 = arith.constant 0 : i32
    return %c0_i32, %c0_i32_0 : i32, i32
  }
  func.func @transform_6(%arg0: i32) -> (i32, i32) {
    %c0_i32 = arith.constant 0 : i32
    %c0_i32_0 = arith.constant 0 : i32
    %c0_i32_1 = arith.constant 0 : i32
    return %c0_i32, %c0_i32_0 : i32, i32
  }
  func.func @transform_7(%arg0: i32) -> (i32, i32) {
    %c0_i32 = arith.constant 0 : i32
    %c0_i32_0 = arith.constant 0 : i32
    return %arg0, %c0_i32 : i32, i32
  }
}

</mosaic_0001>

<llo_original>
// kernel: multitask_forward.1
$region0: #{multitask_forward.1}
  #allocation0 [shape = 'u32[]', space=smem, size = 0x4, offset = 0x4, fixed_abs, tag = 'smem constant byte address 0x4 - core index']
  #allocation1 [shape = 'u32[72,128]{1,0:T(1,128)}', space=vmem, size = 0x9000, scoped, tag = 'internal scratch']
  %s0 = inlined_call_operand.vmem [shape: f32[512,11], index: 0, kind: input, shape index: {}]
  %s1 = inlined_call_operand.vmem [shape: bf16[11,128], index: 1, kind: input, shape index: {}]
  %s2 = inlined_call_operand.vmem [shape: f32[1,128], index: 2, kind: input, shape index: {}]
  %s3 = inlined_call_operand.vmem [shape: bf16[128,64], index: 3, kind: input, shape index: {}]
  %s4 = inlined_call_operand.vmem [shape: f32[1,64], index: 4, kind: input, shape index: {}]
  %s5 = inlined_call_operand.vmem [shape: bf16[64,8], index: 5, kind: input, shape index: {}]
  %s6 = inlined_call_operand.vmem [shape: f32[1,8], index: 6, kind: input, shape index: {}]
  %s7 = inlined_call_operand.vmem [shape: bf16[512,8], index: 7, kind: output, shape index: {}]
  %s8 = sld [smem:[#allocation0]]
  $region61: #{multitask_forward.1} parent=0
    _
  %s10 = ssub.s32 1, %s8
  %s11 = scalar_select 0, %s10, %s8
  loop: start=0, step=1, limit=4
  $region2: #{multitask_forward.1} parent=0 // loop_pre_header
    _
  $region3: #{multitask_forward.1} parent=0 // loop_header
    %s13 = sphi 0, %s17
    %p14 = scmp.ge.s32.totalorder %s13, 4
    %s23 = sphi 0, %s25
    %s26 = sphi 0, %s23
    %s27 = sphi 0, %s26
    %s43 = sphi 0, %s27
    %s47 = sphi 0, %s47
    %s49 = sphi 0, %s47
    %s50 = sphi 0, %s49
    %s64 = sphi 0, %s50
    %s68 = sphi 0, %s68
    %s70 = sphi 0, %s68
    %s71 = sphi 0, %s70
    %s85 = sphi 0, %s71
    %s89 = sphi 0, %s89
    %s91 = sphi 0, %s89
    %s92 = sphi 0, %s91
    %s106 = sphi 0, %s92
    %s110 = sphi 0, %s110
    %s112 = sphi 0, %s110
    %s113 = sphi 0, %s112
    %s127 = sphi 0, %s113
    %s131 = sphi 0, %s131
    %s133 = sphi 0, %s131
    %s134 = sphi 0, %s133
    %s148 = sphi 0, %s134
    %s152 = sphi 0, %s152
    %s154 = sphi 0, %s152
    %s155 = sphi 0, %s154
    %s169 = sphi 0, %s155
    %s175 = sphi 0, %s177
    %s178 = sphi 0, %s175
    %s179 = sphi 0, %s178
    %s195 = sphi 0, %s179
  $region4: #{multitask_forward.1} parent=0 // loop_header_branch
    %16 = sbr.rel (%p14) target = $region8
  $region5: #{multitask_forward.1} parent=0 // loop_body
    %s18 = ssub.s32 %s13, 1
    %s19 = ssub.s32 %s13, 2
    %s20 = sadd.s32 %s13, 1
    %s21 = ssub.s32 %s13, %s20
    %p22 = scmp.eq.s32.totalorder %s21, 0
    %s24 = sadd.s32 %s23, 1
    %s25 = scalar_select %p22, %s23, %s24
    %p28 = pneg %p22
    %p29 = scmp.eq.s32.totalorder %s13, 1
    %p30 = por %p28, %p29
    %p31 = scmp.ne.s32.totalorder %s23, %s26
    %p32 = scmp.eq.s32.totalorder %s13, 0
    %p33 = por %p31, %p32
    %p34 = scmp.ne.s32.totalorder %s23, %s26
    %p35 = scmp.eq.s32.totalorder %s18, 1
    %p36 = por %p34, %p35
    %p37 = scmp.ne.s32.totalorder %s26, %s27
    %p38 = scmp.eq.s32.totalorder %s18, 0
    %p39 = por %p37, %p38
    %p40 = scmp.ne.s32.totalorder %s26, %s27
    %p41 = scmp.eq.s32.totalorder %s19, 1
    %p42 = por %p40, %p41
    %p44 = scmp.ne.s32.totalorder %s27, %s43
    %p45 = scmp.eq.s32.totalorder %s19, 0
    %p46 = por %p44, %p45
    %s48 = sadd.s32 %s47, 1
    %p51 = scmp.eq.s32.totalorder %s13, 1
    %p52 = scmp.ne.s32.totalorder %s47, %s49
    %p53 = scmp.eq.s32.totalorder %s13, 0
    %p54 = por %p52, %p53
    %p55 = scmp.ne.s32.totalorder %s47, %s49
    %p56 = scmp.eq.s32.totalorder %s18, 1
    %p57 = por %p55, %p56
    %p58 = scmp.ne.s32.totalorder %s49, %s50
    %p59 = scmp.eq.s32.totalorder %s18, 0
    %p60 = por %p58, %p59
    %p61 = scmp.ne.s32.totalorder %s49, %s50
    %p62 = scmp.eq.s32.totalorder %s19, 1
    %p63 = por %p61, %p62
    %p65 = scmp.ne.s32.totalorder %s50, %s64
    %p66 = scmp.eq.s32.totalorder %s19, 0
    %p67 = por %p65, %p66
    %s69 = sadd.s32 %s68, 1
    %p72 = scmp.eq.s32.totalorder %s13, 1
    %p73 = scmp.ne.s32.totalorder %s68, %s70
    %p74 = scmp.eq.s32.totalorder %s13, 0
    %p75 = por %p73, %p74
    %p76 = scmp.ne.s32.totalorder %s68, %s70
    %p77 = scmp.eq.s32.totalorder %s18, 1
    %p78 = por %p76, %p77
    %p79 = scmp.ne.s32.totalorder %s70, %s71
    %p80 = scmp.eq.s32.totalorder %s18, 0
    %p81 = por %p79, %p80
    %p82 = scmp.ne.s32.totalorder %s70, %s71
    %p83 = scmp.eq.s32.totalorder %s19, 1
    %p84 = por %p82, %p83
    %p86 = scmp.ne.s32.totalorder %s71, %s85
    %p87 = scmp.eq.s32.totalorder %s19, 0
    %p88 = por %p86, %p87
    %s90 = sadd.s32 %s89, 1
    %p93 = scmp.eq.s32.totalorder %s13, 1
    %p94 = scmp.ne.s32.totalorder %s89, %s91
    %p95 = scmp.eq.s32.totalorder %s13, 0
    %p96 = por %p94, %p95
    %p97 = scmp.ne.s32.totalorder %s89, %s91
    %p98 = scmp.eq.s32.totalorder %s18, 1
    %p99 = por %p97, %p98
    %p100 = scmp.ne.s32.totalorder %s91, %s92
    %p101 = scmp.eq.s32.totalorder %s18, 0
    %p102 = por %p100, %p101
    %p103 = scmp.ne.s32.totalorder %s91, %s92
    %p104 = scmp.eq.s32.totalorder %s19, 1
    %p105 = por %p103, %p104
    %p107 = scmp.ne.s32.totalorder %s92, %s106
    %p108 = scmp.eq.s32.totalorder %s19, 0
    %p109 = por %p107, %p108
    %s111 = sadd.s32 %s110, 1
    %p114 = scmp.eq.s32.totalorder %s13, 1
    %p115 = scmp.ne.s32.totalorder %s110, %s112
    %p116 = scmp.eq.s32.totalorder %s13, 0
    %p117 = por %p115, %p116
    %p118 = scmp.ne.s32.totalorder %s110, %s112
    %p119 = scmp.eq.s32.totalorder %s18, 1
    %p120 = por %p118, %p119
    %p121 = scmp.ne.s32.totalorder %s112, %s113
    %p122 = scmp.eq.s32.totalorder %s18, 0
    %p123 = por %p121, %p122
    %p124 = scmp.ne.s32.totalorder %s112, %s113
    %p125 = scmp.eq.s32.totalorder %s19, 1
    %p126 = por %p124, %p125
    %p128 = scmp.ne.s32.totalorder %s113, %s127
    %p129 = scmp.eq.s32.totalorder %s19, 0
    %p130 = por %p128, %p129
    %s132 = sadd.s32 %s131, 1
    %p135 = scmp.eq.s32.totalorder %s13, 1
    %p136 = scmp.ne.s32.totalorder %s131, %s133
    %p137 = scmp.eq.s32.totalorder %s13, 0
    %p138 = por %p136, %p137
    %p139 = scmp.ne.s32.totalorder %s131, %s133
    %p140 = scmp.eq.s32.totalorder %s18, 1
    %p141 = por %p139, %p140
    %p142 = scmp.ne.s32.totalorder %s133, %s134
    %p143 = scmp.eq.s32.totalorder %s18, 0
    %p144 = por %p142, %p143
    %p145 = scmp.ne.s32.totalorder %s133, %s134
    %p146 = scmp.eq.s32.totalorder %s19, 1
    %p147 = por %p145, %p146
    %p149 = scmp.ne.s32.totalorder %s134, %s148
    %p150 = scmp.eq.s32.totalorder %s19, 0
    %p151 = por %p149, %p150
    %s153 = sadd.s32 %s152, 1
    %p156 = scmp.eq.s32.totalorder %s13, 1
    %p157 = scmp.ne.s32.totalorder %s152, %s154
    %p158 = scmp.eq.s32.totalorder %s13, 0
    %p159 = por %p157, %p158
    %p160 = scmp.ne.s32.totalorder %s152, %s154
    %p161 = scmp.eq.s32.totalorder %s18, 1
    %p162 = por %p160, %p161
    %p163 = scmp.ne.s32.totalorder %s154, %s155
    %p164 = scmp.eq.s32.totalorder %s18, 0
    %p165 = por %p163, %p164
    %p166 = scmp.ne.s32.totalorder %s154, %s155
    %p167 = scmp.eq.s32.totalorder %s19, 1
    %p168 = por %p166, %p167
    %p170 = scmp.ne.s32.totalorder %s155, %s169
    %p171 = scmp.eq.s32.totalorder %s19, 0
    %p172 = por %p170, %p171
    %s173 = ssub.s32 %s13, %s20
    %p174 = scmp.eq.s32.totalorder %s173, 0
    %s176 = sadd.s32 %s175, 1
    %s177 = scalar_select %p174, %s175, %s176
    %p180 = pneg %p174
    %p181 = scmp.eq.s32.totalorder %s13, 1
    %p182 = por %p180, %p181
    %p183 = scmp.ne.s32.totalorder %s175, %s178
    %p184 = scmp.eq.s32.totalorder %s13, 0
    %p185 = por %p183, %p184
    %p186 = scmp.ne.s32.totalorder %s175, %s178
    %p187 = scmp.eq.s32.totalorder %s18, 1
    %p188 = por %p186, %p187
    %p189 = scmp.ne.s32.totalorder %s178, %s179
    %p190 = scmp.eq.s32.totalorder %s18, 0
    %p191 = por %p189, %p190
    %p192 = scmp.ne.s32.totalorder %s178, %s179
    %p193 = scmp.eq.s32.totalorder %s19, 1
    %p194 = por %p192, %p193
    %p196 = scmp.ne.s32.totalorder %s179, %s195
    %p197 = scmp.eq.s32.totalorder %s19, 0
    %p198 = por %p196, %p197
    %p199 = scmp.le.s32.totalorder 1, %s13
    %p200 = scmp.lt.s32.totalorder %s13, 3
    %p201 = pnand %p199, %p200
    %p202 = pneg %p201
    // Predicated region
    $region9: #{multitask_forward.1} parent=5 // pred_check
      _
    $region10: #{multitask_forward.1} parent=5 // pred_check_branch
      %204 = sbr.rel (%p201) target = $region12
    $region11: #{multitask_forward.1} parent=5 // pred_region
      %s205 = ssub.s32 %s13, 1
      // Predicated region
      $region13: #{multitask_forward.1} parent=11 // pred_check
        %p206 = pneg %p60
      $region14: #{multitask_forward.1} parent=11 // pred_check_branch
        %208 = sbr.rel (%p206) target = $region16
      $region15: #{multitask_forward.1} parent=11 // pred_region
        _
      $region16: #{multitask_forward.1} parent=11 // pred_fallthru
        _
      // Predicated region
      $region17: #{multitask_forward.1} parent=11 // pred_check
        %p209 = pneg %p81
      $region18: #{multitask_forward.1} parent=11 // pred_check_branch
        %211 = sbr.rel (%p209) target = $region20
      $region19: #{multitask_forward.1} parent=11 // pred_region
        _
      $region20: #{multitask_forward.1} parent=11 // pred_fallthru
        _
      // Predicated region
      $region21: #{multitask_forward.1} parent=11 // pred_check
        %p212 = pneg %p102
      $region22: #{multitask_forward.1} parent=11 // pred_check_branch
        %214 = sbr.rel (%p212) target = $region24
      $region23: #{multitask_forward.1} parent=11 // pred_region
        _
      $region24: #{multitask_forward.1} parent=11 // pred_fallthru
        _
      // Predicated region
      $region25: #{multitask_forward.1} parent=11 // pred_check
        %p215 = pneg %p123
      $region26: #{multitask_forward.1} parent=11 // pred_check_branch
        %217 = sbr.rel (%p215) target = $region28
      $region27: #{multitask_forward.1} parent=11 // pred_region
        _
      $region28: #{multitask_forward.1} parent=11 // pred_fallthru
        _
      // Predicated region
      $region29: #{multitask_forward.1} parent=11 // pred_check
        %p218 = pneg %p144
      $region30: #{multitask_forward.1} parent=11 // pred_check_branch
        %220 = sbr.rel (%p218) target = $region32
      $region31: #{multitask_forward.1} parent=11 // pred_region
        _
      $region32: #{multitask_forward.1} parent=11 // pred_fallthru
        _
      // Predicated region
      $region33: #{multitask_forward.1} parent=11 // pred_check
        %p221 = pneg %p165
      $region34: #{multitask_forward.1} parent=11 // pred_check_branch
        %223 = sbr.rel (%p221) target = $region36
      $region35: #{multitask_forward.1} parent=11 // pred_region
        _
      $region36: #{multitask_forward.1} parent=11 // pred_fallthru
        _
    $region12: #{multitask_forward.1} parent=5 // pred_fallthru
      _
    %p224 = scmp.lt.s32.totalorder %s13, 2
    // Predicated region
    $region37: #{multitask_forward.1} parent=5 // pred_check
      %p225 = pneg %p224
    $region38: #{multitask_forward.1} parent=5 // pred_check_branch
      %227 = sbr.rel (%p225) target = $region40
    $region39: #{multitask_forward.1} parent=5 // pred_region
      // Predicated region
      $region41: #{multitask_forward.1} parent=39 // pred_check
        %p228 = pneg %p33
      $region42: #{multitask_forward.1} parent=39 // pred_check_branch
        %230 = sbr.rel (%p228) target = $region44
      $region43: #{multitask_forward.1} parent=39 // pred_region
        %s231 = smul.u32 32, %s13
        %p232 = scmp.lt.s32.totalorder %s231, 63
        %s233 = scalar_select %p232, %s231, 63
        %s234 = smul.addr %s233, 8
        %s235 = scalar_lea.vmem %s0, %s234
        %s236 = smul.u32 32, %s13
      $region44: #{multitask_forward.1} parent=39 // pred_fallthru
        _
    $region40: #{multitask_forward.1} parent=5 // pred_fallthru
      _
    %p237 = scmp.le.s32.totalorder 1, %s13
    %p238 = scmp.lt.s32.totalorder %s13, 3
    %p239 = pnand %p237, %p238
    %p240 = pneg %p239
    // Predicated region
    $region45: #{multitask_forward.1} parent=5 // pred_check
      _
    $region46: #{multitask_forward.1} parent=5 // pred_check_branch
      %242 = sbr.rel (%p239) target = $region48
    $region47: #{multitask_forward.1} parent=5 // pred_region
      %s243 = ssub.s32 %s13, 1
      %s244 = smul.u32 32, %s18
      %p245 = scmp.lt.s32.totalorder %s244, 63
      %s246 = scalar_select %p245, %s244, 63
      %s247 = smul.addr %s246, 8
      %s248 = scalar_lea.vmem %s0, %s247
      %p249 = pneg %p39
      %p250 = pneg %p36
      %p251 = pneg %p60
      %p252 = pneg %p57
      %p253 = pneg %p81
      %p254 = pneg %p78
      %p255 = pneg %p102
      %p256 = pneg %p99
      %p257 = pneg %p123
      %p258 = pneg %p120
      %p259 = pneg %p144
      %p260 = pneg %p141
      %p261 = pneg %p165
      %p262 = pneg %p162
      %p263 = pneg %p191
      %p264 = pneg %p188
      %s265 = smul.u32 32, %s18
      %p266 = scmp.lt.s32.totalorder %s265, 63
      %s267 = scalar_select %p266, %s265, 63
      %s268 = smul.addr %s267, 4
      %s269 = scalar_lea.vmem %s7, %s268
      %s270 = smul.u32 32, %s18
      %p271 = scmp.lt.s32.totalorder %s270, 63
      %s272 = scalar_select %p271, %s270, 63
      %s273 = smul.addr %s272, 8
      %s274 = scalar_lea.vmem %s0, %s273
      %s275 = smul.u32 32, %s18
      %s276 = smul.u32 32, %s18
      %p277 = scmp.lt.s32.totalorder %s276, 63
      %s278 = scalar_select %p277, %s276, 63
      %s279 = smul.addr %s278, 4
      %s280 = scalar_lea.vmem %s7, %s279
      %s281 = smul.u32 32, %s18
      %v283 = vld [vmem:[%s274] sm:$0xff]
      %v284 = vld [vmem:[%s274 + $0x8] sm:$0xff]
      %v285 = vld [vmem:[%s274 + $0x10] sm:$0xff]
      %v286 = vld [vmem:[%s274 + $0x18] sm:$0xff]
      %v287 = vld [vmem:[%s274 + $0x20] sm:$0xff]
      %v288 = vld [vmem:[%s274 + $0x28] sm:$0xff]
      %v289 = vld [vmem:[%s274 + $0x30] sm:$0xff]
      %v290 = vld [vmem:[%s274 + $0x38] sm:$0xff]
      %v291 = vld [vmem:[%s274 + $0x40] sm:$0xff]
      %v292 = vld [vmem:[%s274 + $0x48] sm:$0xff]
      %v293 = vld [vmem:[%s274 + $0x50] sm:$0xff]
      %v294 = vld [vmem:[%s274 + $0x58] sm:$0xff]
      %v295 = vld [vmem:[%s274 + $0x60] sm:$0xff]
      %v296 = vld [vmem:[%s274 + $0x68] sm:$0xff]
      %v297 = vld [vmem:[%s274 + $0x70] sm:$0xff]
      %v298 = vld [vmem:[%s274 + $0x78] sm:$0xff]
      %v299 = vld [vmem:[%s274 + $0x80] sm:$0xff]
      %v300 = vld [vmem:[%s274 + $0x88] sm:$0xff]
      %v301 = vld [vmem:[%s274 + $0x90] sm:$0xff]
      %v302 = vld [vmem:[%s274 + $0x98] sm:$0xff]
      %v303 = vld [vmem:[%s274 + $0xa0] sm:$0xff]
      %v304 = vld [vmem:[%s274 + $0xa8] sm:$0xff]
      %v305 = vld [vmem:[%s274 + $0xb0] sm:$0xff]
      %v306 = vld [vmem:[%s274 + $0xb8] sm:$0xff]
      %v307 = vld [vmem:[%s274 + $0xc0] sm:$0xff]
      %v308 = vld [vmem:[%s274 + $0xc8] sm:$0xff]
      %v309 = vld [vmem:[%s274 + $0xd0] sm:$0xff]
      %v310 = vld [vmem:[%s274 + $0xd8] sm:$0xff]
      %v311 = vld [vmem:[%s274 + $0xe0] sm:$0xff]
      %v312 = vld [vmem:[%s274 + $0xe8] sm:$0xff]
      %v313 = vld [vmem:[%s274 + $0xf0] sm:$0xff]
      %v314 = vld [vmem:[%s274 + $0xf8] sm:$0xff]
      %v315 = vpack.c.bf16 %v284, %v283
      %v316 = vpack.c.bf16 %v286, %v285
      %v317 = vpack.c.bf16 %v288, %v287
      %v318 = vpack.c.bf16 %v290, %v289
      %v319 = vpack.c.bf16 %v292, %v291
      %v320 = vpack.c.bf16 %v294, %v293
      %v321 = vpack.c.bf16 %v296, %v295
      %v322 = vpack.c.bf16 %v298, %v297
      %v323 = vpack.c.bf16 %v300, %v299
      %v324 = vpack.c.bf16 %v302, %v301
      %v325 = vpack.c.bf16 %v304, %v303
      %v326 = vpack.c.bf16 %v306, %v305
      %v327 = vpack.c.bf16 %v308, %v307
      %v328 = vpack.c.bf16 %v310, %v309
      %v329 = vpack.c.bf16 %v312, %v311
      %v330 = vpack.c.bf16 %v314, %v313
      %v331 = vld [vmem:[%s1] sm:$0xf]
      %v332 = vld [vmem:[%s1 + $0x4] sm:$0x3]
      %v333 = vld [vmem:[%s2] sm:$0x1]
      %v335 = vperm.slane %v333, 0
      %v339 = vunpack.c.l.b16 %v331
      %v340 = vunpack.c.l.b16 %v332
      %v341 = vpack.c.b16 %v340, %v339
      %vm342 = vcmask 89088
      %v344 = vsel %vm342, %v315, 0
      %v347 = vsel %vm342, %v316, 0
      %v350 = vsel %vm342, %v317, 0
      %v353 = vsel %vm342, %v318, 0
      %v356 = vsel %vm342, %v319, 0
      %v359 = vsel %vm342, %v320, 0
      %v362 = vsel %vm342, %v321, 0
      %v365 = vsel %vm342, %v322, 0
      %v368 = vsel %vm342, %v323, 0
      %v371 = vsel %vm342, %v324, 0
      %v374 = vsel %vm342, %v325, 0
      %v377 = vsel %vm342, %v326, 0
      %v380 = vsel %vm342, %v327, 0
      %v383 = vsel %vm342, %v328, 0
      %v386 = vsel %vm342, %v329, 0
      %v389 = vsel %vm342, %v330, 0
      %vm391 = vcmask 1044480
      %vm392 = vcmask 1045504
      %v393 = vsel %vm391, 4294967295, 65535
      %v394 = vsel %vm392, %v393, 0
      %v396 = vand.u32 %v341, %v394
      %398 = vmatpush.bf16.msra.mxu0 0
      %399 = vmatpush.bf16.msra.mxu0 0
      %400 = vmatpush.bf16.msra.mxu0 0
      %401 = vmatpush.bf16.msra.mxu0 0
      %402 = vmatpush.bf16.msra.mxu0 0
      %403 = vmatpush.bf16.msra.mxu0 0
      %404 = vmatpush.bf16.msra.mxu0 0
      %405 = vmatpush.bf16.msra.mxu0 %v396
      %406 = vmatmul.bf16.gmra.mxu0 %v344
      %v407 = vpop.f32.mrf.mxu0
      %v408 = vadd.f32 %v335, %v407
      %v409 = vpop.f32.mrf.mxu0
      %v410 = vadd.f32 %v335, %v409
      %411 = vmatmul.bf16.gmra.mxu0 %v347
      %v412 = vpop.f32.mrf.mxu0
      %v413 = vadd.f32 %v335, %v412
      %v414 = vpop.f32.mrf.mxu0
      %v415 = vadd.f32 %v335, %v414
      %416 = vmatmul.bf16.gmra.mxu0 %v350
      %v417 = vpop.f32.mrf.mxu0
      %v418 = vadd.f32 %v335, %v417
      %v419 = vpop.f32.mrf.mxu0
      %v420 = vadd.f32 %v335, %v419
      %421 = vmatmul.bf16.gmra.mxu0 %v353
      %v422 = vpop.f32.mrf.mxu0
      %v423 = vadd.f32 %v335, %v422
      %v424 = vpop.f32.mrf.mxu0
      %v425 = vadd.f32 %v335, %v424
      %426 = vmatmul.bf16.gmra.mxu0 %v356
      %v427 = vpop.f32.mrf.mxu0
      %v428 = vadd.f32 %v335, %v427
      %v429 = vpop.f32.mrf.mxu0
      %v430 = vadd.f32 %v335, %v429
      %431 = vmatmul.bf16.gmra.mxu0 %v359
      %v432 = vpop.f32.mrf.mxu0
      %v433 = vadd.f32 %v335, %v432
      %v434 = vpop.f32.mrf.mxu0
      %v435 = vadd.f32 %v335, %v434
      %436 = vmatmul.bf16.gmra.mxu0 %v362
      %v437 = vpop.f32.mrf.mxu0
      %v438 = vadd.f32 %v335, %v437
      %v439 = vpop.f32.mrf.mxu0
      %v440 = vadd.f32 %v335, %v439
      %441 = vmatmul.bf16.gmra.mxu0 %v365
      %v442 = vpop.f32.mrf.mxu0
      %v443 = vadd.f32 %v335, %v442
      %v444 = vpop.f32.mrf.mxu0
      %v445 = vadd.f32 %v335, %v444
      %446 = vmatmul.bf16.gmra.mxu0 %v368
      %v447 = vpop.f32.mrf.mxu0
      %v448 = vadd.f32 %v335, %v447
      %v449 = vpop.f32.mrf.mxu0
      %v450 = vadd.f32 %v335, %v449
      %451 = vmatmul.bf16.gmra.mxu0 %v371
      %v452 = vpop.f32.mrf.mxu0
      %v453 = vadd.f32 %v335, %v452
      %v454 = vpop.f32.mrf.mxu0
      %v455 = vadd.f32 %v335, %v454
      %456 = vmatmul.bf16.gmra.mxu0 %v374
      %v457 = vpop.f32.mrf.mxu0
      %v458 = vadd.f32 %v335, %v457
      %v459 = vpop.f32.mrf.mxu0
      %v460 = vadd.f32 %v335, %v459
      %461 = vmatmul.bf16.gmra.mxu0 %v377
      %v462 = vpop.f32.mrf.mxu0
      %v463 = vadd.f32 %v335, %v462
      %v464 = vpop.f32.mrf.mxu0
      %v465 = vadd.f32 %v335, %v464
      %466 = vmatmul.bf16.gmra.mxu0 %v380
      %v467 = vpop.f32.mrf.mxu0
      %v468 = vadd.f32 %v335, %v467
      %v469 = vpop.f32.mrf.mxu0
      %v470 = vadd.f32 %v335, %v469
      %471 = vmatmul.bf16.gmra.mxu0 %v383
      %v472 = vpop.f32.mrf.mxu0
      %v473 = vadd.f32 %v335, %v472
      %v474 = vpop.f32.mrf.mxu0
      %v475 = vadd.f32 %v335, %v474
      %476 = vmatmul.bf16.gmra.mxu0 %v386
      %v477 = vpop.f32.mrf.mxu0
      %v478 = vadd.f32 %v335, %v477
      %v479 = vpop.f32.mrf.mxu0
      %v480 = vadd.f32 %v335, %v479
      %481 = vmatmul.bf16.gmra.mxu0 %v389
      %v482 = vpop.f32.mrf.mxu0
      %v483 = vadd.f32 %v335, %v482
      %v484 = vpop.f32.mrf.mxu0
      %v485 = vadd.f32 %v335, %v484
      %486 = vdwg.mxu0
      %v487 = vmax.f32 %v408, 0.0
      %v488 = vmax.f32 %v410, 0.0
      %v489 = vmax.f32 %v413, 0.0
      %v490 = vmax.f32 %v415, 0.0
      %v491 = vmax.f32 %v418, 0.0
      %v492 = vmax.f32 %v420, 0.0
      %v493 = vmax.f32 %v423, 0.0
      %v494 = vmax.f32 %v425, 0.0
      %v495 = vmax.f32 %v428, 0.0
      %v496 = vmax.f32 %v430, 0.0
      %v497 = vmax.f32 %v433, 0.0
      %v498 = vmax.f32 %v435, 0.0
      %v499 = vmax.f32 %v438, 0.0
      %v500 = vmax.f32 %v440, 0.0
      %v501 = vmax.f32 %v443, 0.0
      %v502 = vmax.f32 %v445, 0.0
      %v503 = vmax.f32 %v448, 0.0
      %v504 = vmax.f32 %v450, 0.0
      %v505 = vmax.f32 %v453, 0.0
      %v506 = vmax.f32 %v455, 0.0
      %v507 = vmax.f32 %v458, 0.0
      %v508 = vmax.f32 %v460, 0.0
      %v509 = vmax.f32 %v463, 0.0
      %v510 = vmax.f32 %v465, 0.0
      %v511 = vmax.f32 %v468, 0.0
      %v512 = vmax.f32 %v470, 0.0
      %v513 = vmax.f32 %v473, 0.0
      %v514 = vmax.f32 %v475, 0.0
      %v515 = vmax.f32 %v478, 0.0
      %v516 = vmax.f32 %v480, 0.0
      %v517 = vmax.f32 %v483, 0.0
      %v518 = vmax.f32 %v485, 0.0
      %v519 = vpack.c.bf16 %v488, %v487
      %v520 = vpack.c.bf16 %v490, %v489
      %v521 = vpack.c.bf16 %v492, %v491
      %v522 = vpack.c.bf16 %v494, %v493
      %v523 = vpack.c.bf16 %v496, %v495
      %v524 = vpack.c.bf16 %v498, %v497
      %v525 = vpack.c.bf16 %v500, %v499
      %v526 = vpack.c.bf16 %v502, %v501
      %v527 = vpack.c.bf16 %v504, %v503
      %v528 = vpack.c.bf16 %v506, %v505
      %v529 = vpack.c.bf16 %v508, %v507
      %v530 = vpack.c.bf16 %v510, %v509
      %v531 = vpack.c.bf16 %v512, %v511
      %v532 = vpack.c.bf16 %v514, %v513
      %v533 = vpack.c.bf16 %v516, %v515
      %v534 = vpack.c.bf16 %v518, %v517
      %v535 = vld [vmem:[%s3] sm:$0xf]
      %v536 = vld [vmem:[%s3 + $0x4] sm:$0xf]
      %v537 = vld [vmem:[%s3 + $0x8] sm:$0xf]
      %v538 = vld [vmem:[%s3 + $0xc] sm:$0xf]
      %v539 = vld [vmem:[%s3 + $0x10] sm:$0xf]
      %v540 = vld [vmem:[%s3 + $0x14] sm:$0xf]
      %v541 = vld [vmem:[%s3 + $0x18] sm:$0xf]
      %v542 = vld [vmem:[%s3 + $0x1c] sm:$0xf]
      %v543 = vld [vmem:[%s3 + $0x20] sm:$0xf]
      %v544 = vld [vmem:[%s3 + $0x24] sm:$0xf]
      %v545 = vld [vmem:[%s3 + $0x28] sm:$0xf]
      %v546 = vld [vmem:[%s3 + $0x2c] sm:$0xf]
      %v547 = vld [vmem:[%s3 + $0x30] sm:$0xf]
      %v548 = vld [vmem:[%s3 + $0x34] sm:$0xf]
      %v549 = vld [vmem:[%s3 + $0x38] sm:$0xf]
      %v550 = vld [vmem:[%s3 + $0x3c] sm:$0xf]
      %v551 = vld [vmem:[%s4] sm:$0x1]
      %v553 = vperm.slane %v551, 0
      %v571 = vunpack.c.l.b16 %v535
      %v572 = vunpack.c.l.b16 %v536
      %v573 = vunpack.c.l.b16 %v537
      %v574 = vunpack.c.l.b16 %v538
      %v575 = vunpack.c.l.b16 %v539
      %v576 = vunpack.c.l.b16 %v540
      %v577 = vunpack.c.l.b16 %v541
      %v578 = vunpack.c.l.b16 %v542
      %v579 = vunpack.c.l.b16 %v543
      %v580 = vunpack.c.l.b16 %v544
      %v581 = vunpack.c.l.b16 %v545
      %v582 = vunpack.c.l.b16 %v546
      %v583 = vunpack.c.l.b16 %v547
      %v584 = vunpack.c.l.b16 %v548
      %v585 = vunpack.c.l.b16 %v549
      %v586 = vunpack.c.l.b16 %v550
      %v587 = vpack.c.b16 %v572, %v571
      %v588 = vpack.c.b16 %v574, %v573
      %v589 = vpack.c.b16 %v576, %v575
      %v590 = vpack.c.b16 %v578, %v577
      %v591 = vpack.c.b16 %v580, %v579
      %v592 = vpack.c.b16 %v582, %v581
      %v593 = vpack.c.b16 %v584, %v583
      %v594 = vpack.c.b16 %v586, %v585
      %603 = vmatpush.bf16.msra.mxu0 %v594
      %604 = vmatpush.bf16.msra.mxu0 %v593
      %605 = vmatpush.bf16.msra.mxu0 %v592
      %606 = vmatpush.bf16.msra.mxu0 %v591
      %607 = vmatpush.bf16.msra.mxu0 %v590
      %608 = vmatpush.bf16.msra.mxu0 %v589
      %609 = vmatpush.bf16.msra.mxu0 %v588
      %610 = vmatpush.bf16.msra.mxu0 %v587
      %611 = vmatmul.bf16.gmra.mxu0 %v519
      %v612 = vpop.f32.mrf.mxu0
      %v613 = vadd.f32 %v553, %v612
      %v614 = vpop.f32.mrf.mxu0
      %v615 = vadd.f32 %v553, %v614
      %616 = vmatmul.bf16.gmra.mxu0 %v520
      %v617 = vpop.f32.mrf.mxu0
      %v618 = vadd.f32 %v553, %v617
      %v619 = vpop.f32.mrf.mxu0
      %v620 = vadd.f32 %v553, %v619
      %621 = vmatmul.bf16.gmra.mxu0 %v521
      %v622 = vpop.f32.mrf.mxu0
      %v623 = vadd.f32 %v553, %v622
      %v624 = vpop.f32.mrf.mxu0
      %v625 = vadd.f32 %v553, %v624
      %626 = vmatmul.bf16.gmra.mxu0 %v522
      %v627 = vpop.f32.mrf.mxu0
      %v628 = vadd.f32 %v553, %v627
      %v629 = vpop.f32.mrf.mxu0
      %v630 = vadd.f32 %v553, %v629
      %631 = vmatmul.bf16.gmra.mxu0 %v523
      %v632 = vpop.f32.mrf.mxu0
      %v633 = vadd.f32 %v553, %v632
      %v634 = vpop.f32.mrf.mxu0
      %v635 = vadd.f32 %v553, %v634
      %636 = vmatmul.bf16.gmra.mxu0 %v524
      %v637 = vpop.f32.mrf.mxu0
      %v638 = vadd.f32 %v553, %v637
      %v639 = vpop.f32.mrf.mxu0
      %v640 = vadd.f32 %v553, %v639
      %641 = vmatmul.bf16.gmra.mxu0 %v525
      %v642 = vpop.f32.mrf.mxu0
      %v643 = vadd.f32 %v553, %v642
      %v644 = vpop.f32.mrf.mxu0
      %v645 = vadd.f32 %v553, %v644
      %646 = vmatmul.bf16.gmra.mxu0 %v526
      %v647 = vpop.f32.mrf.mxu0
      %v648 = vadd.f32 %v553, %v647
      %v649 = vpop.f32.mrf.mxu0
      %v650 = vadd.f32 %v553, %v649
      %651 = vmatmul.bf16.gmra.mxu0 %v527
      %v652 = vpop.f32.mrf.mxu0
      %v653 = vadd.f32 %v553, %v652
      %v654 = vpop.f32.mrf.mxu0
      %v655 = vadd.f32 %v553, %v654
      %656 = vmatmul.bf16.gmra.mxu0 %v528
      %v657 = vpop.f32.mrf.mxu0
      %v658 = vadd.f32 %v553, %v657
      %v659 = vpop.f32.mrf.mxu0
      %v660 = vadd.f32 %v553, %v659
      %661 = vmatmul.bf16.gmra.mxu0 %v529
      %v662 = vpop.f32.mrf.mxu0
      %v663 = vadd.f32 %v553, %v662
      %v664 = vpop.f32.mrf.mxu0
      %v665 = vadd.f32 %v553, %v664
      %666 = vmatmul.bf16.gmra.mxu0 %v530
      %v667 = vpop.f32.mrf.mxu0
      %v668 = vadd.f32 %v553, %v667
      %v669 = vpop.f32.mrf.mxu0
      %v670 = vadd.f32 %v553, %v669
      %671 = vmatmul.bf16.gmra.mxu0 %v531
      %v672 = vpop.f32.mrf.mxu0
      %v673 = vadd.f32 %v553, %v672
      %v674 = vpop.f32.mrf.mxu0
      %v675 = vadd.f32 %v553, %v674
      %676 = vmatmul.bf16.gmra.mxu0 %v532
      %v677 = vpop.f32.mrf.mxu0
      %v678 = vadd.f32 %v553, %v677
      %v679 = vpop.f32.mrf.mxu0
      %v680 = vadd.f32 %v553, %v679
      %681 = vmatmul.bf16.gmra.mxu0 %v533
      %v682 = vpop.f32.mrf.mxu0
      %v683 = vadd.f32 %v553, %v682
      %v684 = vpop.f32.mrf.mxu0
      %v685 = vadd.f32 %v553, %v684
      %686 = vmatmul.bf16.gmra.mxu0 %v534
      %v687 = vpop.f32.mrf.mxu0
      %v688 = vadd.f32 %v553, %v687
      %v689 = vpop.f32.mrf.mxu0
      %v690 = vadd.f32 %v553, %v689
      %691 = vdwg.mxu0
      %v692 = vmax.f32 %v613, 0.0
      %v693 = vmax.f32 %v615, 0.0
      %v694 = vmax.f32 %v618, 0.0
      %v695 = vmax.f32 %v620, 0.0
      %v696 = vmax.f32 %v623, 0.0
      %v697 = vmax.f32 %v625, 0.0
      %v698 = vmax.f32 %v628, 0.0
      %v699 = vmax.f32 %v630, 0.0
      %v700 = vmax.f32 %v633, 0.0
      %v701 = vmax.f32 %v635, 0.0
      %v702 = vmax.f32 %v638, 0.0
      %v703 = vmax.f32 %v640, 0.0
      %v704 = vmax.f32 %v643, 0.0
      %v705 = vmax.f32 %v645, 0.0
      %v706 = vmax.f32 %v648, 0.0
      %v707 = vmax.f32 %v650, 0.0
      %v708 = vmax.f32 %v653, 0.0
      %v709 = vmax.f32 %v655, 0.0
      %v710 = vmax.f32 %v658, 0.0
      %v711 = vmax.f32 %v660, 0.0
      %v712 = vmax.f32 %v663, 0.0
      %v713 = vmax.f32 %v665, 0.0
      %v714 = vmax.f32 %v668, 0.0
      %v715 = vmax.f32 %v670, 0.0
      %v716 = vmax.f32 %v673, 0.0
      %v717 = vmax.f32 %v675, 0.0
      %v718 = vmax.f32 %v678, 0.0
      %v719 = vmax.f32 %v680, 0.0
      %v720 = vmax.f32 %v683, 0.0
      %v721 = vmax.f32 %v685, 0.0
      %v722 = vmax.f32 %v688, 0.0
      %v723 = vmax.f32 %v690, 0.0
      %v724 = vpack.c.bf16 %v693, %v692
      %v725 = vpack.c.bf16 %v695, %v694
      %v726 = vpack.c.bf16 %v697, %v696
      %v727 = vpack.c.bf16 %v699, %v698
      %v728 = vpack.c.bf16 %v701, %v700
      %v729 = vpack.c.bf16 %v703, %v702
      %v730 = vpack.c.bf16 %v705, %v704
      %v731 = vpack.c.bf16 %v707, %v706
      %v732 = vpack.c.bf16 %v709, %v708
      %v733 = vpack.c.bf16 %v711, %v710
      %v734 = vpack.c.bf16 %v713, %v712
      %v735 = vpack.c.bf16 %v715, %v714
      %v736 = vpack.c.bf16 %v717, %v716
      %v737 = vpack.c.bf16 %v719, %v718
      %v738 = vpack.c.bf16 %v721, %v720
      %v739 = vpack.c.bf16 %v723, %v722
      %v740 = vld [vmem:[%s5] sm:$0xf]
      %v741 = vld [vmem:[%s5 + $0x4] sm:$0xf]
      %v742 = vld [vmem:[%s5 + $0x8] sm:$0xf]
      %v743 = vld [vmem:[%s5 + $0xc] sm:$0xf]
      %v744 = vld [vmem:[%s5 + $0x10] sm:$0xf]
      %v745 = vld [vmem:[%s5 + $0x14] sm:$0xf]
      %v746 = vld [vmem:[%s5 + $0x18] sm:$0xf]
      %v747 = vld [vmem:[%s5 + $0x1c] sm:$0xf]
      %v748 = vld [vmem:[%s6] sm:$0x1]
      %v750 = vperm.slane %v748, 0
      %v760 = vunpack.c.l.b16 %v740
      %v761 = vunpack.c.l.b16 %v741
      %v762 = vunpack.c.l.b16 %v742
      %v763 = vunpack.c.l.b16 %v743
      %v764 = vunpack.c.l.b16 %v744
      %v765 = vunpack.c.l.b16 %v745
      %v766 = vunpack.c.l.b16 %v746
      %v767 = vunpack.c.l.b16 %v747
      %v768 = vpack.c.b16 %v761, %v760
      %v769 = vpack.c.b16 %v763, %v762
      %v770 = vpack.c.b16 %v765, %v764
      %v771 = vpack.c.b16 %v767, %v766
      %vm776 = vcmask 523264
      %v778 = vsel %vm776, %v724, 0
      %v781 = vsel %vm776, %v725, 0
      %v784 = vsel %vm776, %v726, 0
      %v787 = vsel %vm776, %v727, 0
      %v790 = vsel %vm776, %v728, 0
      %v793 = vsel %vm776, %v729, 0
      %v796 = vsel %vm776, %v730, 0
      %v799 = vsel %vm776, %v731, 0
      %v802 = vsel %vm776, %v732, 0
      %v805 = vsel %vm776, %v733, 0
      %v808 = vsel %vm776, %v734, 0
      %v811 = vsel %vm776, %v735, 0
      %v814 = vsel %vm776, %v736, 0
      %v817 = vsel %vm776, %v737, 0
      %v820 = vsel %vm776, %v738, 0
      %v823 = vsel %vm776, %v739, 0
      %825 = vmatpush.bf16.msra.mxu0 0
      %826 = vmatpush.bf16.msra.mxu0 0
      %827 = vmatpush.bf16.msra.mxu0 0
      %828 = vmatpush.bf16.msra.mxu0 0
      %829 = vmatpush.bf16.msra.mxu0 %v771
      %830 = vmatpush.bf16.msra.mxu0 %v770
      %831 = vmatpush.bf16.msra.mxu0 %v769
      %832 = vmatpush.bf16.msra.mxu0 %v768
      %833 = vmatmul.bf16.gmra.mxu0 %v778
      %v834 = vpop.f32.mrf.mxu0
      %v835 = vadd.f32 %v750, %v834
      %v836 = vpop.f32.mrf.mxu0
      %v837 = vadd.f32 %v750, %v836
      %838 = vmatmul.bf16.gmra.mxu0 %v781
      %v839 = vpop.f32.mrf.mxu0
      %v840 = vadd.f32 %v750, %v839
      %v841 = vpop.f32.mrf.mxu0
      %v842 = vadd.f32 %v750, %v841
      %843 = vmatmul.bf16.gmra.mxu0 %v784
      %v844 = vpop.f32.mrf.mxu0
      %v845 = vadd.f32 %v750, %v844
      %v846 = vpop.f32.mrf.mxu0
      %v847 = vadd.f32 %v750, %v846
      %848 = vmatmul.bf16.gmra.mxu0 %v787
      %v849 = vpop.f32.mrf.mxu0
      %v850 = vadd.f32 %v750, %v849
      %v851 = vpop.f32.mrf.mxu0
      %v852 = vadd.f32 %v750, %v851
      %853 = vmatmul.bf16.gmra.mxu0 %v790
      %v854 = vpop.f32.mrf.mxu0
      %v855 = vadd.f32 %v750, %v854
      %v856 = vpop.f32.mrf.mxu0
      %v857 = vadd.f32 %v750, %v856
      %858 = vmatmul.bf16.gmra.mxu0 %v793
      %v859 = vpop.f32.mrf.mxu0
      %v860 = vadd.f32 %v750, %v859
      %v861 = vpop.f32.mrf.mxu0
      %v862 = vadd.f32 %v750, %v861
      %863 = vmatmul.bf16.gmra.mxu0 %v796
      %v864 = vpop.f32.mrf.mxu0
      %v865 = vadd.f32 %v750, %v864
      %v866 = vpop.f32.mrf.mxu0
      %v867 = vadd.f32 %v750, %v866
      %868 = vmatmul.bf16.gmra.mxu0 %v799
      %v869 = vpop.f32.mrf.mxu0
      %v870 = vadd.f32 %v750, %v869
      %v871 = vpop.f32.mrf.mxu0
      %v872 = vadd.f32 %v750, %v871
      %873 = vmatmul.bf16.gmra.mxu0 %v802
      %v874 = vpop.f32.mrf.mxu0
      %v875 = vadd.f32 %v750, %v874
      %v876 = vpop.f32.mrf.mxu0
      %v877 = vadd.f32 %v750, %v876
      %878 = vmatmul.bf16.gmra.mxu0 %v805
      %v879 = vpop.f32.mrf.mxu0
      %v880 = vadd.f32 %v750, %v879
      %v881 = vpop.f32.mrf.mxu0
      %v882 = vadd.f32 %v750, %v881
      %883 = vmatmul.bf16.gmra.mxu0 %v808
      %v884 = vpop.f32.mrf.mxu0
      %v885 = vadd.f32 %v750, %v884
      %v886 = vpop.f32.mrf.mxu0
      %v887 = vadd.f32 %v750, %v886
      %888 = vmatmul.bf16.gmra.mxu0 %v811
      %v889 = vpop.f32.mrf.mxu0
      %v890 = vadd.f32 %v750, %v889
      %v891 = vpop.f32.mrf.mxu0
      %v892 = vadd.f32 %v750, %v891
      %893 = vmatmul.bf16.gmra.mxu0 %v814
      %v894 = vpop.f32.mrf.mxu0
      %v895 = vadd.f32 %v750, %v894
      %v896 = vpop.f32.mrf.mxu0
      %v897 = vadd.f32 %v750, %v896
      %898 = vmatmul.bf16.gmra.mxu0 %v817
      %v899 = vpop.f32.mrf.mxu0
      %v900 = vadd.f32 %v750, %v899
      %v901 = vpop.f32.mrf.mxu0
      %v902 = vadd.f32 %v750, %v901
      %903 = vmatmul.bf16.gmra.mxu0 %v820
      %v904 = vpop.f32.mrf.mxu0
      %v905 = vadd.f32 %v750, %v904
      %v906 = vpop.f32.mrf.mxu0
      %v907 = vadd.f32 %v750, %v906
      %908 = vmatmul.bf16.gmra.mxu0 %v823
      %v909 = vpop.f32.mrf.mxu0
      %v910 = vadd.f32 %v750, %v909
      %v911 = vpop.f32.mrf.mxu0
      %v912 = vadd.f32 %v750, %v911
      %913 = vdwg.mxu0
      %v914 = vpack.c.bf16 %v835, %v835
      %v915 = vpack.c.bf16 %v837, %v837
      %v916 = vpack.c.bf16 %v840, %v840
      %v917 = vpack.c.bf16 %v842, %v842
      %v918 = vpack.c.bf16 %v845, %v845
      %v919 = vpack.c.bf16 %v847, %v847
      %v920 = vpack.c.bf16 %v850, %v850
      %v921 = vpack.c.bf16 %v852, %v852
      %v922 = vpack.c.bf16 %v855, %v855
      %v923 = vpack.c.bf16 %v857, %v857
      %v924 = vpack.c.bf16 %v860, %v860
      %v925 = vpack.c.bf16 %v862, %v862
      %v926 = vpack.c.bf16 %v865, %v865
      %v927 = vpack.c.bf16 %v867, %v867
      %v928 = vpack.c.bf16 %v870, %v870
      %v929 = vpack.c.bf16 %v872, %v872
      %v930 = vpack.c.bf16 %v875, %v875
      %v931 = vpack.c.bf16 %v877, %v877
      %v932 = vpack.c.bf16 %v880, %v880
      %v933 = vpack.c.bf16 %v882, %v882
      %v934 = vpack.c.bf16 %v885, %v885
      %v935 = vpack.c.bf16 %v887, %v887
      %v936 = vpack.c.bf16 %v890, %v890
      %v937 = vpack.c.bf16 %v892, %v892
      %v938 = vpack.c.bf16 %v895, %v895
      %v939 = vpack.c.bf16 %v897, %v897
      %v940 = vpack.c.bf16 %v900, %v900
      %v941 = vpack.c.bf16 %v902, %v902
      %v942 = vpack.c.bf16 %v905, %v905
      %v943 = vpack.c.bf16 %v907, %v907
      %v944 = vpack.c.bf16 %v910, %v910
      %v945 = vpack.c.bf16 %v912, %v912
      %vm946 = vcmask 60416
      %947 = vst.msk [vmem:[%s280] sm:$0xf] %vm946, %v914
      %948 = vst.msk [vmem:[%s280 + $0x4] sm:$0xf] %vm946, %v915
      %949 = vst.msk [vmem:[%s280 + $0x8] sm:$0xf] %vm946, %v916
      %950 = vst.msk [vmem:[%s280 + $0xc] sm:$0xf] %vm946, %v917
      %951 = vst.msk [vmem:[%s280 + $0x10] sm:$0xf] %vm946, %v918
      %952 = vst.msk [vmem:[%s280 + $0x14] sm:$0xf] %vm946, %v919
      %953 = vst.msk [vmem:[%s280 + $0x18] sm:$0xf] %vm946, %v920
      %954 = vst.msk [vmem:[%s280 + $0x1c] sm:$0xf] %vm946, %v921
      %955 = vst.msk [vmem:[%s280 + $0x20] sm:$0xf] %vm946, %v922
      %956 = vst.msk [vmem:[%s280 + $0x24] sm:$0xf] %vm946, %v923
      %957 = vst.msk [vmem:[%s280 + $0x28] sm:$0xf] %vm946, %v924
      %958 = vst.msk [vmem:[%s280 + $0x2c] sm:$0xf] %vm946, %v925
      %959 = vst.msk [vmem:[%s280 + $0x30] sm:$0xf] %vm946, %v926
      %960 = vst.msk [vmem:[%s280 + $0x34] sm:$0xf] %vm946, %v927
      %961 = vst.msk [vmem:[%s280 + $0x38] sm:$0xf] %vm946, %v928
      %962 = vst.msk [vmem:[%s280 + $0x3c] sm:$0xf] %vm946, %v929
      %963 = vst.msk [vmem:[%s280 + $0x40] sm:$0xf] %vm946, %v930
      %964 = vst.msk [vmem:[%s280 + $0x44] sm:$0xf] %vm946, %v931
      %965 = vst.msk [vmem:[%s280 + $0x48] sm:$0xf] %vm946, %v932
      %966 = vst.msk [vmem:[%s280 + $0x4c] sm:$0xf] %vm946, %v933
      %967 = vst.msk [vmem:[%s280 + $0x50] sm:$0xf] %vm946, %v934
      %968 = vst.msk [vmem:[%s280 + $0x54] sm:$0xf] %vm946, %v935
      %969 = vst.msk [vmem:[%s280 + $0x58] sm:$0xf] %vm946, %v936
      %970 = vst.msk [vmem:[%s280 + $0x5c] sm:$0xf] %vm946, %v937
      %971 = vst.msk [vmem:[%s280 + $0x60] sm:$0xf] %vm946, %v938
      %972 = vst.msk [vmem:[%s280 + $0x64] sm:$0xf] %vm946, %v939
      %973 = vst.msk [vmem:[%s280 + $0x68] sm:$0xf] %vm946, %v940
      %974 = vst.msk [vmem:[%s280 + $0x6c] sm:$0xf] %vm946, %v941
      %975 = vst.msk [vmem:[%s280 + $0x70] sm:$0xf] %vm946, %v942
      %976 = vst.msk [vmem:[%s280 + $0x74] sm:$0xf] %vm946, %v943
      %977 = vst.msk [vmem:[%s280 + $0x78] sm:$0xf] %vm946, %v944
      %978 = vst.msk [vmem:[%s280 + $0x7c] sm:$0xf] %vm946, %v945
      %s979 = smul.u32 32, %s18
      %p980 = scmp.lt.s32.totalorder %s979, 63
      %s981 = scalar_select %p980, %s979, 63
      %s982 = smul.addr %s981, 4
      %s983 = scalar_lea.vmem %s7, %s982
      // Predicated region
      $region49: #{multitask_forward.1} parent=47 // pred_check
        %p984 = pneg %p188
      $region50: #{multitask_forward.1} parent=47 // pred_check_branch
        %986 = sbr.rel (%p984) target = $region52
      $region51: #{multitask_forward.1} parent=47 // pred_region
        %s987 = smul.u32 32, %s18
      $region52: #{multitask_forward.1} parent=47 // pred_fallthru
        _
    $region48: #{multitask_forward.1} parent=5 // pred_fallthru
      _
    %p988 = scmp.le.s32.totalorder 2, %s13
    // Predicated region
    $region53: #{multitask_forward.1} parent=5 // pred_check
      %p989 = pneg %p988
    $region54: #{multitask_forward.1} parent=5 // pred_check_branch
      %991 = sbr.rel (%p989) target = $region56
    $region55: #{multitask_forward.1} parent=5 // pred_region
      %s992 = ssub.s32 %s13, 2
      // Predicated region
      $region57: #{multitask_forward.1} parent=55 // pred_check
        %p993 = pneg %p194
      $region58: #{multitask_forward.1} parent=55 // pred_check_branch
        %995 = sbr.rel (%p993) target = $region60
      $region59: #{multitask_forward.1} parent=55 // pred_region
        %s996 = smul.u32 32, %s19
        %p997 = scmp.lt.s32.totalorder %s996, 63
        %s998 = scalar_select %p997, %s996, 63
        %s999 = smul.addr %s998, 4
        %s1000 = scalar_lea.vmem %s7, %s999
      $region60: #{multitask_forward.1} parent=55 // pred_fallthru
        _
    $region56: #{multitask_forward.1} parent=5 // pred_fallthru
      _
  $region6: #{multitask_forward.1} parent=0 // loop_footer
    %s17 = sadd.s32 1, %s13
  $region7: #{multitask_forward.1} parent=0 // loop_footer_branch
    %12 = sbr.rel target = $region3
  $region8: #{multitask_forward.1} parent=0 // loop_exit
    _

</llo_original>
